<compile_context>
chip_gen: v6e
topology: v6e:2x2x1
jax: 0.10.0
libtpu: 0.0.40
codegen_flags: <defaults>
</compile_context>

<pallas_src>
import jax
import jax.numpy as jnp
from jax.experimental import pallas as pl
from jax.experimental.pallas import tpu as pltpu


def _left_net_kernel(w_ref, b_ref, x_ref, o_ref):
    # w_ref: SMEM (3,) f32, b_ref: SMEM (1,) f32
    # x_ref: VMEM (24, BC) f32 -- rows 0:8 feat0, 8:16 feat1, 16:24 feat2
    # o_ref: VMEM (16, BC) f32 -- rows 0:8 = 1 - sigmoid, 8:16 = sigmoid
    logits = (x_ref[0:8, :] * w_ref[0]
              + x_ref[8:16, :] * w_ref[1]
              + x_ref[16:24, :] * w_ref[2]
              + b_ref[0])                              # (8, BC), dense vregs
    s = jax.nn.sigmoid(logits)                         # EUP slot

    # Two full-width, unmasked 8-sublane stores (replaces the 2-lane concat).
    # Keep 1 - s (not sigmoid(-logits)) to match the PyTorch reference exactly.
    o_ref[0:8, :] = 1.0 - s
    o_ref[8:16, :] = s


def left_neural_net_forward(x, weight, bias, *, tile=131072):
    """x: (N, 3) f32, weight: (1, 3) or (3,) f32, bias: (1,) f32 -> (N, 2) f32."""
    n, f = x.shape
    assert f == 3, "left_neural_net expects 3 input features"

    x = x.astype(jnp.float32)
    w_flat = jnp.asarray(weight, jnp.float32).reshape(f)   # (3,) -> SMEM prefetch
    b_flat = jnp.asarray(bias, jnp.float32).reshape(1)     # (1,) -> SMEM prefetch

    # Batch padded only to a multiple of 8 (sublane fold); no full-tile pad.
    n8 = pl.cdiv(n, 8) * 8
    cols = n8 // 8

    # Tile (in samples): multiple of 1024 so the lane width (tile//8) is a
    # multiple of 128; capped so tiny batches don't over-allocate.
    tile = max(1024, (int(tile) // 1024) * 1024)
    tile = min(tile, pl.cdiv(n8, 1024) * 1024)
    bc = tile // 8                                  # block lane width (mult. of 128)
    grid = (pl.cdiv(cols, bc),)                     # ragged trailing block is fine

    # Feature-major + fold 8 samples onto the sublane axis:
    # (N,3) -> (3,N8) -> (24, N8/8).  Row r (r<8), col c <-> sample r*cols + c.
    # TODO(synk): have the producer emit x feature-major (or fuse this transpose
    # into the pallas_call) to remove one extra HBM pass over the input.
    x_t = jnp.transpose(x)                                      # (3, N)
    if n8 != n:
        x_t = jnp.pad(x_t, ((0, 0), (0, n8 - n)))               # pad <= 7 samples
    x24 = x_t.reshape(24, cols)

    # Sublane-padding-aware VMEM budget: input block (24,bc) + output (16,bc),
    # double-buffered, with headroom; clipped to stay inside v7x's 64 MiB/TC.
    block_bytes = (24 + 16) * bc * 4
    vmem_limit = min(max(int(2.5 * 2 * block_bytes), 32 << 20), 48 << 20)

    out16 = pl.pallas_call(
        _left_net_kernel,
        out_shape=jax.ShapeDtypeStruct((16, cols), jnp.float32),
        grid_spec=pltpu.PrefetchScalarGridSpec(
            num_scalar_prefetch=2,                              # weight, bias -> SMEM
            grid=grid,
            in_specs=[
                pl.BlockSpec((24, bc), lambda i, w, b: (0, i)),  # x tile
            ],
            out_specs=pl.BlockSpec((16, bc), lambda i, w, b: (0, i)),
        ),
        compiler_params=pltpu.CompilerParams(
            # TODO(synk): if "parallel" does not split across both v7x TCs,
            # switch this axis to pltpu.CORE_PARALLEL.
            dimension_semantics=("parallel",),
            vmem_limit_bytes=vmem_limit,
        ),
        cost_estimate=pl.CostEstimate(
            flops=5 * n, transcendentals=n, bytes_accessed=20 * n),
    )(w_flat, b_flat, x24)

    # (16, cols) -> (2, N8) is a free row-major merge; transpose back to (N, 2)
    # to match the PyTorch layout and drop the <=7 padded samples.
    # TODO(synk): consumers that accept the (2, N) layout avoid this final
    # 16N-byte transpose pass entirely.
    out2 = out16.reshape(2, n8)
    return jnp.transpose(out2)[:n]


def _reference(x, weight, bias):
    w = jnp.asarray(weight, jnp.float32).reshape(1, 3)
    b = jnp.asarray(bias, jnp.float32).reshape(1)
    logits = x.astype(jnp.float32) @ w.T + b
    s = jax.nn.sigmoid(logits)
    return jnp.concatenate([1.0 - s, s], axis=1)


if __name__ == "__main__":
    key = jax.random.PRNGKey(0)
    kx1, kx2, kw, kb = jax.random.split(key, 4)

    F = 3
    # torch.nn.Linear(3, 1) default init: uniform in [-1/sqrt(fan_in), 1/sqrt(fan_in)].
    bound = 1.0 / (3.0 ** 0.5)
    weight = jax.random.uniform(kw, (1, F), minval=-bound, maxval=bound, dtype=jnp.float32)
    bias = jax.random.uniform(kb, (1,), minval=-bound, maxval=bound, dtype=jnp.float32)

    fwd = jax.jit(left_neural_net_forward, static_argnames=("tile",))

    # Small batch, not a multiple of 8 (exercises the <=7-sample tail pad).
    N1 = 13
    x1 = jax.random.normal(kx1, (N1, F), dtype=jnp.float32)
    out1 = jax.block_until_ready(fwd(x1, weight, bias))
    assert out1.shape == (N1, 2)
    assert jnp.allclose(out1, _reference(x1, weight, bias), atol=1e-5), "mismatch (N=13)"

    # Larger batch with a small tile: multi-block grid + ragged trailing block.
    N2 = 3000
    x2 = jax.random.normal(kx2, (N2, F), dtype=jnp.float32)
    out2 = jax.block_until_ready(fwd(x2, weight, bias, tile=1024))
    assert out2.shape == (N2, 2)
    assert jnp.allclose(out2, _reference(x2, weight, bias), atol=1e-5), "mismatch (N=3000)"

    print("KERNEL_OK")
</pallas_src>

<mosaic_0001>
module attributes {stable_mosaic.version = 11 : i64} {
  func.func @_left_net_kernel(%arg0: i32, %arg1: memref<3xf32, #tpu.memory_space<smem>>, %arg2: memref<1xf32, #tpu.memory_space<smem>>, %arg3: memref<24x128xf32, #tpu.memory_space<vmem>>, %arg4: memref<16x128xf32, #tpu.memory_space<vmem>>) attributes {dimension_semantics = [#tpu.dimension_semantics<parallel>], iteration_bounds = array<i64: 1>, scalar_prefetch = 2 : i64, scratch_operands = 0 : i64, tpu.core_type = #tpu.core_type<tc>, window_params = [{transform_indices = @transform_0, window_bounds = array<i64: 24, 128>}, {transform_indices = @transform_1, window_bounds = array<i64: 16, 128>}]} {
    %c0 = arith.constant 0 : index
    %c0_0 = arith.constant 0 : index
    %0 = vector.load %arg3[%c0, %c0_0] : memref<24x128xf32, #tpu.memory_space<vmem>>, vector<8x128xf32>
    %c0_1 = arith.constant 0 : index
    %1 = memref.load %arg1[%c0_1] : memref<3xf32, #tpu.memory_space<smem>>
    %2 = vector.broadcast %1 : f32 to vector<8x128xf32>
    %3 = arith.mulf %0, %2 : vector<8x128xf32>
    %c8 = arith.constant 8 : index
    %c0_2 = arith.constant 0 : index
    %4 = vector.load %arg3[%c8, %c0_2] : memref<24x128xf32, #tpu.memory_space<vmem>>, vector<8x128xf32>
    %c1 = arith.constant 1 : index
    %5 = memref.load %arg1[%c1] : memref<3xf32, #tpu.memory_space<smem>>
    %6 = vector.broadcast %5 : f32 to vector<8x128xf32>
    %7 = arith.mulf %4, %6 : vector<8x128xf32>
    %8 = arith.addf %3, %7 : vector<8x128xf32>
    %c16 = arith.constant 16 : index
    %c0_3 = arith.constant 0 : index
    %9 = vector.load %arg3[%c16, %c0_3] : memref<24x128xf32, #tpu.memory_space<vmem>>, vector<8x128xf32>
    %c2 = arith.constant 2 : index
    %10 = memref.load %arg1[%c2] : memref<3xf32, #tpu.memory_space<smem>>
    %11 = vector.broadcast %10 : f32 to vector<8x128xf32>
    %12 = arith.mulf %9, %11 : vector<8x128xf32>
    %13 = arith.addf %8, %12 : vector<8x128xf32>
    %c0_4 = arith.constant 0 : index
    %14 = memref.load %arg2[%c0_4] : memref<1xf32, #tpu.memory_space<smem>>
    %15 = vector.broadcast %14 : f32 to vector<8x128xf32>
    %16 = arith.addf %13, %15 : vector<8x128xf32>
    %17 = arith.negf %16 : vector<8x128xf32>
    %18 = math.exp %17 : vector<8x128xf32>
    %cst = arith.constant 1.000000e+00 : f32
    %19 = vector.broadcast %cst : f32 to vector<8x128xf32>
    %20 = arith.addf %19, %18 : vector<8x128xf32>
    %21 = arith.divf %19, %20 : vector<8x128xf32>
    %cst_5 = arith.constant 1.000000e+00 : f32
    %22 = vector.broadcast %cst_5 : f32 to vector<8x128xf32>
    %23 = arith.subf %22, %21 : vector<8x128xf32>
    %c0_6 = arith.constant 0 : index
    %c0_7 = arith.constant 0 : index
    %24 = vector.load %arg4[%c0_6, %c0_7] : memref<16x128xf32, #tpu.memory_space<vmem>>, vector<8x128xf32>
    tpu.vector_store %arg4[%c0_6, %c0_7], %23 {strides = array<i32>} : memref<16x128xf32, #tpu.memory_space<vmem>>, vector<8x128xf32>,
    %c8_8 = arith.constant 8 : index
    %c0_9 = arith.constant 0 : index
    %25 = vector.load %arg4[%c8_8, %c0_9] : memref<16x128xf32, #tpu.memory_space<vmem>>, vector<8x128xf32>
    tpu.vector_store %arg4[%c8_8, %c0_9], %21 {strides = array<i32>} : memref<16x128xf32, #tpu.memory_space<vmem>>, vector<8x128xf32>,
    return
  }
  func.func @transform_0(%arg0: i32, %arg1: memref<3xf32, #tpu.memory_space<smem>>, %arg2: memref<1xf32, #tpu.memory_space<smem>>) -> (i32, i32) {
    %c0_i32 = arith.constant 0 : i32
    %c0_i32_0 = arith.constant 0 : i32
    return %c0_i32, %arg0 : i32, i32
  }
  func.func @transform_1(%arg0: i32, %arg1: memref<3xf32, #tpu.memory_space<smem>>, %arg2: memref<1xf32, #tpu.memory_space<smem>>) -> (i32, i32) {
    %c0_i32 = arith.constant 0 : i32
    %c0_i32_0 = arith.constant 0 : i32
    return %c0_i32, %arg0 : i32, i32
  }
}

</mosaic_0001>

<llo_original>
// kernel: left_neural_net_forward.1
$region0: #{left_neural_net_forward.1}
  #allocation0 [shape = 'u32[]', space=smem, size = 0x4, offset = 0x4, fixed_abs, tag = 'smem constant byte address 0x4 - core index']
  #allocation1 [shape = 'u32[144,128]{1,0:T(1,128)}', space=vmem, size = 0x12000, scoped, tag = 'internal scratch']
  #allocation2 [shape = 's32[1]{0}', space=sflag, size = 0x4, scoped, tag = 'scoped memory for left_neural_net_forward.1']
  #allocation3 [shape = 'u8[512]{0}', space=smem, size = 0x200, scoped, tag = 'prefetched SMEM operand 0']
  #allocation4 [shape = 'f32[1]{0:T(128)S(6)}', space=smem, size = 0x200, scoped, tag = 'prefetched SMEM operand 1']
  %s0 = inlined_call_operand.vmem [shape: f32[3], index: 0, kind: input, shape index: {}]
  %s1 = inlined_call_operand.<no memory space> [shape: f32[1], index: 1, kind: input, shape index: {}]
  %s2 = inlined_call_operand.vmem [shape: f32[24,2], index: 2, kind: input, shape index: {}]
  %s3 = inlined_call_operand.vmem [shape: f32[16,2], index: 3, kind: output, shape index: {}]
  %s4 = sld [smem:[#allocation0]]
  $region14: #{left_neural_net_forward.1} parent=0
    _
  %s6 = ssub.s32 1, %s4
  %s7 = scalar_select 0, %s6, %s4
  %s8 = sshll.u32 %s0, 4
  %s9 = int_to_ptr.vmem [resolvable:$true] %s8
  %11 = dma.vmem_to_smem %s9, 16, [#allocation3], [#allocation2]
  %12 = sst [smem:[#allocation4]] %s1
  %13 = dma.done [#allocation2], 16
  %14 = sfence
  // Predicated region
  $region2: #{left_neural_net_forward.1} parent=0 // pred_check
    _
  $region3: #{left_neural_net_forward.1} parent=0 // pred_check_branch
    %16 = sbr.rel (0) target = $region5
  $region4: #{left_neural_net_forward.1} parent=0 // pred_region
    _
  $region5: #{left_neural_net_forward.1} parent=0 // pred_fallthru
    _
  %v17 = vld [vmem:[%s2] sm:$0xff]
  %s18 = sld [smem:[#allocation3]]
  %v19 = vstv %s18
  %v20 = vmul.f32 %v17, %v19
  %v21 = vld [vmem:[%s2 + $0x8] sm:$0xff]
  %s22 = sld [smem:[#allocation3 + $0x1]]
  %v23 = vstv %s22
  %v24 = vmul.f32 %v21, %v23
  %v25 = vadd.f32 %v20, %v24
  %v26 = vld [vmem:[%s2 + $0x10] sm:$0xff]
  %s27 = sld [smem:[#allocation3 + $0x2]]
  %v28 = vstv %s27
  %v29 = vmul.f32 %v26, %v28
  %v30 = vadd.f32 %v25, %v29
  %s31 = sld [smem:[#allocation4]]
  %v32 = vstv %s31
  %v33 = vadd.f32 %v30, %v32
  %v34 = vxor.u32 %v33, 2147483648
  %v35 = vmul.f32 %v34, 1.442695
  %v36 = vpow.pop %v35
  %v37 = vadd.f32 %v36, 1.0
  %v38 = vrcp.pop %v37
  %v39 = vmul.f32 1.0, %v38
  %v40 = vsub.f32 1.0, %v39
  %41 = vst [vmem:[%s3] sm:$0xff] %v40
  %42 = vst [vmem:[%s3 + $0x8] sm:$0xff] %v39
  // Predicated region
  $region6: #{left_neural_net_forward.1} parent=0 // pred_check
    _
  $region7: #{left_neural_net_forward.1} parent=0 // pred_check_branch
    %44 = sbr.rel (0) target = $region9
  $region8: #{left_neural_net_forward.1} parent=0 // pred_region
    _
  $region9: #{left_neural_net_forward.1} parent=0 // pred_fallthru
    _
  // Predicated region
  $region10: #{left_neural_net_forward.1} parent=0 // pred_check
    _
  $region11: #{left_neural_net_forward.1} parent=0 // pred_check_branch
    %46 = sbr.rel (0) target = $region13
  $region12: #{left_neural_net_forward.1} parent=0 // pred_region
    _
  $region13: #{left_neural_net_forward.1} parent=0 // pred_fallthru
    _

</llo_original>
